<compile_context>
chip_gen: v7x
topology: tpu7x:2x2x1
jax: 0.10.0
libtpu: 0.0.40
codegen_flags: <defaults>
</compile_context>

<pallas_src>
import functools

import jax
import jax.numpy as jnp
from jax.experimental import pallas as pl
from jax.experimental.pallas import tpu as pltpu

EPS = 1e-5


def _scoped_vmem_limit():
    """Generation-aware scoped-VMEM limit: ~3/4 of physical VMEM, <= 100 MiB.
    v5e/v6e (128 MiB) -> 96 MiB; v7x (64 MiB) -> 48 MiB; unknown -> 48 MiB."""
    cap = None
    try:
        cap = getattr(pltpu.get_tpu_info(), "vmem_capacity_bytes", None)
    except Exception:
        cap = None
    if not cap:
        cap = 64 * 1024 * 1024  # conservative default (v7x-sized)
    return int(min(cap * 3 // 4, 100 * 1024 * 1024))


def _pick_batch_tile(n, c, hw, block_budget_bytes):
    """Largest divisor of n whose (bn, C, HW) f32 block fits the budget."""
    per_image = c * hw * 4
    best = 1
    for d in range(1, n + 1):
        if n % d == 0 and d * per_image <= block_budget_bytes:
            best = d
    return best


# ---------------------------------------------------------------------------
# Fused path: whole activation resident in VMEM, single launch, 1R + 1W.
# ---------------------------------------------------------------------------
def _fused_kernel(idx_ref, x_ref, ch_ref, w_ref, b_ref, o_ref, *, n_images):
    """Stats + folded affine + apply in a single invocation.

    x_ref : (N*C, HW) f32 -- lane-dense 2-D view of the NCHW activation.
    ch_ref: (N*C, 1) i32  -- channel id of each row (row r -> r % C).
    w_ref / b_ref: (1, 1, C) -- gamma/beta row of the prefetched timepoint
                                (selected by the BlockSpec index_map).
    """
    del idx_ref  # timepoint selection already done by the index_map
    x = x_ref[...].astype(jnp.float32)                       # (NC, HW)
    nc, hw = x.shape
    c = w_ref.shape[-1]
    inv_count = jnp.float32(1.0 / (n_images * hw))

    # One-hot channel mask: onehot[r, j] = 1.0 iff row r belongs to channel j.
    ch_col = ch_ref[...]                                      # (NC, 1)
    lane_ch = jax.lax.broadcasted_iota(jnp.int32, (nc, c), 1)  # (NC, C)
    onehot = (ch_col == lane_ch).astype(jnp.float32)          # (NC, C)

    # Per-channel mean (mask-multiply + sublane reduce; full lane occupancy
    # for the heavy lane reductions over x).
    row_sum = jnp.sum(x, axis=-1, keepdims=True)              # (NC, 1)
    mean = jnp.sum(onehot * row_sum, axis=0, keepdims=True) * inv_count  # (1, C)

    # Centered variance (numerically robust: no E[x^2]-mean^2 cancellation).
    mean_rows = jnp.sum(onehot * mean, axis=-1, keepdims=True)  # (NC, 1)
    d = x - mean_rows
    row_sq = jnp.sum(d * d, axis=-1, keepdims=True)           # (NC, 1)
    var = jnp.sum(onehot * row_sq, axis=0, keepdims=True) * inv_count    # (1, C)
    var = jnp.maximum(var, 0.0)

    # Folded per-channel affine: y = x * scale + shift.
    gamma = w_ref[0]                                          # (1, C)
    beta = b_ref[0]                                           # (1, C)
    scale = gamma * jax.lax.rsqrt(var + jnp.float32(EPS))     # (1, C)
    shift = beta - mean * scale                               # (1, C)
    scale_rows = jnp.sum(onehot * scale, axis=-1, keepdims=True)  # (NC, 1)
    shift_rows = jnp.sum(onehot * shift, axis=-1, keepdims=True)  # (NC, 1)
    o_ref[...] = (x * scale_rows + shift_rows).astype(o_ref.dtype)


def _bn_fused(x2, ch_col, w_row, b_row, key_idx, n_images, vmem_limit, out_dtype):
    """x2: (N*C, HW) f32; ch_col: (N*C, 1) i32; w_row/b_row: (T, 1, C)."""
    nc, hw = x2.shape
    c = w_row.shape[-1]
    kernel = functools.partial(_fused_kernel, n_images=n_images)
    return pl.pallas_call(
        kernel,
        out_shape=jax.ShapeDtypeStruct((nc, hw), out_dtype),
        grid_spec=pltpu.PrefetchScalarGridSpec(
            num_scalar_prefetch=1,
            grid=(1,),
            in_specs=[
                pl.BlockSpec((nc, hw), lambda i, idx: (0, 0)),
                pl.BlockSpec((nc, 1), lambda i, idx: (0, 0)),
                pl.BlockSpec((1, 1, c), lambda i, idx: (idx[0], 0, 0)),
                pl.BlockSpec((1, 1, c), lambda i, idx: (idx[0], 0, 0)),
            ],
            out_specs=pl.BlockSpec((nc, hw), lambda i, idx: (0, 0)),
        ),
        compiler_params=pltpu.CompilerParams(
            dimension_semantics=("arbitrary",),
            vmem_limit_bytes=vmem_limit,
        ),
    )(key_idx, x2, ch_col, w_row, b_row)


# ---------------------------------------------------------------------------
# Streaming 2-pass fallback for activations too large to stay VMEM-resident.
# ---------------------------------------------------------------------------
def _stats_kernel(idx_ref, x_ref, w_ref, b_ref, scale_ref, shift_ref,
                  sum_ref, sq_ref, *, count):
    del idx_ref  # timepoint selection done by the index_map
    i = pl.program_id(0)

    @pl.when(i == 0)
    def _init():
        sum_ref[...] = jnp.zeros_like(sum_ref)
        sq_ref[...] = jnp.zeros_like(sq_ref)

    x = x_ref[...].astype(jnp.float32)                 # (bn, C, HW)
    ps = jnp.sum(x, axis=-1, keepdims=True)            # (bn, C, 1)
    pq = jnp.sum(x * x, axis=-1, keepdims=True)
    sum_ref[...] += jnp.sum(ps, axis=0)                # (C, 1)
    sq_ref[...] += jnp.sum(pq, axis=0)

    @pl.when(i == pl.num_programs(0) - 1)
    def _finalize():
        inv_count = jnp.float32(1.0 / count)
        mean = sum_ref[...] * inv_count                # (C, 1)
        # Single-read E[x^2]-mean^2 with a clamp guarding the cancellation-
        # driven tiny-negative case before rsqrt.
        var = jnp.maximum(sq_ref[...] * inv_count - mean * mean, 0.0)
        inv = jax.lax.rsqrt(var + jnp.float32(EPS))
        gamma = w_ref[0]                               # (C, 1) selected row
        beta = b_ref[0]
        scale = inv * gamma                            # folded affine
        scale_ref[...] = scale
        shift_ref[...] = beta - mean * scale


def _bn_stats(x3, w_col, b_col, key_idx, bn, vmem_limit):
    """x3: (N, C, HW) f32; w_col/b_col: (T, C, 1); key_idx: (1,) i32."""
    N, C, HW = x3.shape
    kernel = functools.partial(_stats_kernel, count=N * HW)
    return pl.pallas_call(
        kernel,
        out_shape=(jax.ShapeDtypeStruct((C, 1), jnp.float32),
                   jax.ShapeDtypeStruct((C, 1), jnp.float32)),
        grid_spec=pltpu.PrefetchScalarGridSpec(
            num_scalar_prefetch=1,
            grid=(N // bn,),
            in_specs=[
                pl.BlockSpec((bn, C, HW), lambda i, idx: (i, 0, 0)),
                pl.BlockSpec((1, C, 1), lambda i, idx: (idx[0], 0, 0)),
                pl.BlockSpec((1, C, 1), lambda i, idx: (idx[0], 0, 0)),
            ],
            out_specs=(
                pl.BlockSpec((C, 1), lambda i, idx: (0, 0)),
                pl.BlockSpec((C, 1), lambda i, idx: (0, 0)),
            ),
            scratch_shapes=[
                pltpu.VMEM((C, 1), jnp.float32),
                pltpu.VMEM((C, 1), jnp.float32),
            ],
        ),
        compiler_params=pltpu.CompilerParams(
            # TODO(synk): on v7x, split this reduction across the two
            # TensorCores (grid (2, N//(2*bn)) with a "parallel" outer axis and
            # per-core partial sums) instead of a single-core walk.
            dimension_semantics=("arbitrary",),
            vmem_limit_bytes=vmem_limit,
        ),
    )(key_idx, x3, w_col, b_col)


def _apply_kernel(x_ref, scale_ref, shift_ref, o_ref):
    # 2 VALU ops per element: y = x*scale + shift (affine folded in pass 1).
    o_ref[...] = (x_ref[...] * scale_ref[...] + shift_ref[...]).astype(o_ref.dtype)


def _bn_apply(x3, scale, shift, bn, vmem_limit, out_dtype):
    N, C, HW = x3.shape
    return pl.pallas_call(
        _apply_kernel,
        out_shape=jax.ShapeDtypeStruct((N, C, HW), out_dtype),
        grid_spec=pltpu.PrefetchScalarGridSpec(
            num_scalar_prefetch=0,
            grid=(N // bn,),
            in_specs=[
                pl.BlockSpec((bn, C, HW), lambda i: (i, 0, 0)),
                pl.BlockSpec((C, 1), lambda i: (0, 0)),
                pl.BlockSpec((C, 1), lambda i: (0, 0)),
            ],
            out_specs=pl.BlockSpec((bn, C, HW), lambda i: (i, 0, 0)),
        ),
        compiler_params=pltpu.CompilerParams(
            dimension_semantics=("parallel",),   # shards across v7x's 2 TCs
            vmem_limit_bytes=vmem_limit,
        ),
    )(x3, scale, shift)


class BatchNormPallas:
    """JAX/Pallas port of the time-indexed `BatchNorm` used inside the ODE
    block of ODENet_mini_MNIST (training-mode nn.BatchNorm2d forward: batch
    statistics over N,H,W per channel; affine params picked by the nearest
    stored timepoint)."""

    def __init__(self, num_features, n_max_tp, endtime, key,
                 out_dtype=jnp.float32):
        self.num_features = num_features
        self.n_max_tp = n_max_tp
        self.endtime = endtime
        # Set to jnp.bfloat16 iff the downstream ODE block tolerates bf16
        # activations (halves apply-pass HBM bytes); f32 preserves semantics.
        self.out_dtype = out_dtype
        if n_max_tp % 2 == 1:
            equi_dist = endtime / (n_max_tp - 1)
        else:
            equi_dist = endtime / n_max_tp
        self.timepoints = jnp.arange(n_max_tp, dtype=jnp.float32) * equi_dist
        # Deterministic synthetic per-timepoint affine params (PyTorch default
        # init is weight=1, bias=0; perturb so timepoint selection matters).
        kw, kb = jax.random.split(key)
        self.weights = 1.0 + 0.1 * jax.random.normal(
            kw, (n_max_tp, num_features), dtype=jnp.float32)
        self.biases = 0.1 * jax.random.normal(
            kb, (n_max_tp, num_features), dtype=jnp.float32)
        # Pre-shaped views so the per-timepoint row is selected purely by the
        # BlockSpec index_map (scalar prefetch), with the block's last two
        # dims equal to the full array dims:
        #   (T, 1, C): row orientation for the fused kernel's (1, C) stats,
        #   (T, C, 1): column orientation for the streaming kernel's (C, 1).
        self.w_row = self.weights.reshape(n_max_tp, 1, num_features)
        self.b_row = self.biases.reshape(n_max_tp, 1, num_features)
        self.w_col = self.weights.reshape(n_max_tp, num_features, 1)
        self.b_col = self.biases.reshape(n_max_tp, num_features, 1)
        # Generation-aware scoped-VMEM budget (queried once, host side).
        self.vmem_limit = _scoped_vmem_limit()
        # TODO(synk): running_mean/running_var buffer updates (training-side
        # state mutation) are not reproduced; forward output does not use them.

    @functools.partial(jax.jit, static_argnums=0)
    def __call__(self, t, x):
        # x: (N, C, H, W) float32
        key_idx = jnp.argmin(jnp.abs(self.timepoints - t)).astype(jnp.int32)
        key_idx = key_idx.reshape((1,))
        N, C, H, W = x.shape
        hw = H * W
        nc = N * C
        limit = self.vmem_limit
        x_bytes = nc * hw * 4
        mask_bytes = nc * C * 4
        if 4 * x_bytes + 4 * mask_bytes + (2 << 20) <= limit:
            # Fused single-launch path: whole x resident, 1 HBM read + 1 write.
            x2 = x.reshape(nc, hw)          # contiguous NCHW view: free
            ch_col = (jnp.arange(nc, dtype=jnp.int32) % jnp.int32(C)
                      ).reshape(nc, 1)
            y2 = _bn_fused(x2, ch_col, self.w_row, self.b_row, key_idx,
                           N, limit, self.out_dtype)
            return y2.reshape(N, C, H, W)
        # Streaming two-pass path (very large activations only).
        x3 = x.reshape(N, C, hw)
        bn = _pick_batch_tile(N, C, hw, limit // 8)
        scale, shift = _bn_stats(x3, self.w_col, self.b_col, key_idx, bn, limit)
        y3 = _bn_apply(x3, scale, shift, bn, limit, self.out_dtype)
        return y3.reshape(N, C, H, W)


def _reference(t, x, timepoints, weights, biases):
    key_idx = jnp.argmin(jnp.abs(timepoints - t))
    gamma = weights[key_idx][None, :, None, None]
    beta = biases[key_idx][None, :, None, None]
    mean = jnp.mean(x, axis=(0, 2, 3), keepdims=True)
    var = jnp.var(x, axis=(0, 2, 3), keepdims=True)
    return (x - mean) / jnp.sqrt(var + EPS) * gamma + beta


if __name__ == "__main__":
    root = jax.random.PRNGKey(0)
    kx, kp = jax.random.split(root)

    num_features = 4
    n_max_tp = 8
    endtime = 1.0
    N, C, H, W = 2, num_features, 16, 16

    bn = BatchNormPallas(num_features, n_max_tp, endtime, kp)
    x = jax.random.normal(kx, (N, C, H, W), dtype=jnp.float32)
    t = jnp.float32(0.37)

    out = jax.block_until_ready(bn(t, x))

    ref = _reference(t, x, bn.timepoints, bn.weights, bn.biases)
    assert out.shape == (N, C, H, W)
    err = float(jnp.max(jnp.abs(out - ref)))
    assert err < 2e-4, f"mismatch vs reference: {err}"

    print("KERNEL_OK")
</pallas_src>

<mosaic_0001>
module attributes {stable_mosaic.version = 11 : i64} {
  func.func @_fused_kernel(%arg0: i32, %arg1: memref<1xi32, #tpu.memory_space<smem>>, %arg2: memref<8x256xf32, #tpu.memory_space<vmem>>, %arg3: memref<8x1xi32, #tpu.memory_space<vmem>>, %arg4: memref<1x1x4xf32, #tpu.memory_space<vmem>>, %arg5: memref<1x1x4xf32, #tpu.memory_space<vmem>>, %arg6: memref<8x256xf32, #tpu.memory_space<vmem>>) attributes {dimension_semantics = [#tpu.dimension_semantics<arbitrary>], iteration_bounds = array<i64: 1>, scalar_prefetch = 1 : i64, scratch_operands = 0 : i64, tpu.core_type = #tpu.core_type<tc>, window_params = [{pipeline_mode = #tpu.pipeline_mode<synchronous>, transform_indices = @transform_0, window_bounds = array<i64: 8, 256>}, {pipeline_mode = #tpu.pipeline_mode<synchronous>, transform_indices = @transform_1, window_bounds = array<i64: 8, 1>}, {transform_indices = @transform_2, window_bounds = array<i64: 1, 1, 4>}, {transform_indices = @transform_3, window_bounds = array<i64: 1, 1, 4>}, {pipeline_mode = #tpu.pipeline_mode<synchronous>, transform_indices = @transform_4, window_bounds = array<i64: 8, 256>}]} {
    %c0 = arith.constant 0 : index
    %c0_0 = arith.constant 0 : index
    %0 = vector.load %arg2[%c0, %c0_0] : memref<8x256xf32, #tpu.memory_space<vmem>>, vector<8x256xf32>
    %c0_1 = arith.constant 0 : index
    %c0_2 = arith.constant 0 : index
    %1 = vector.load %arg3[%c0_1, %c0_2] : memref<8x1xi32, #tpu.memory_space<vmem>>, vector<8x1xi32>
    %2 = tpu.iota {dimensions = array<i32: 1>} : vector<8x4xi32>
    %3 = vector.broadcast %1 : vector<8x1xi32> to vector<8x4xi32>
    %4 = arith.cmpi eq, %3, %2 : vector<8x4xi32>
    %5 = arith.extui %4 : vector<8x4xi1> to vector<8x4xi32>
    %6 = arith.sitofp %5 : vector<8x4xi32> to vector<8x4xf32>
    %cst = arith.constant dense<0.000000e+00> : vector<8xf32>
    %7 = vector.multi_reduction <add>, %0, %cst [1] : vector<8x256xf32> to vector<8xf32>
    %8 = vector.shape_cast %7 : vector<8xf32> to vector<8x1xf32>
    %9 = vector.broadcast %8 : vector<8x1xf32> to vector<8x4xf32>
    %10 = arith.mulf %6, %9 : vector<8x4xf32>
    %cst_3 = arith.constant dense<0.000000e+00> : vector<4xf32>
    %11 = vector.multi_reduction <add>, %10, %cst_3 [0] : vector<8x4xf32> to vector<4xf32>
    %12 = vector.shape_cast %11 : vector<4xf32> to vector<1x4xf32>
    %cst_4 = arith.constant 0.001953125 : f32
    %13 = vector.broadcast %cst_4 : f32 to vector<1x4xf32>
    %14 = arith.mulf %12, %13 : vector<1x4xf32>
    %15 = vector.broadcast %14 : vector<1x4xf32> to vector<8x4xf32>
    %16 = arith.mulf %6, %15 : vector<8x4xf32>
    %cst_5 = arith.constant dense<0.000000e+00> : vector<8xf32>
    %17 = vector.multi_reduction <add>, %16, %cst_5 [1] : vector<8x4xf32> to vector<8xf32>
    %18 = vector.shape_cast %17 : vector<8xf32> to vector<8x1xf32>
    %19 = vector.broadcast %18 : vector<8x1xf32> to vector<8x256xf32>
    %20 = arith.subf %0, %19 : vector<8x256xf32>
    %21 = arith.mulf %20, %20 : vector<8x256xf32>
    %cst_6 = arith.constant dense<0.000000e+00> : vector<8xf32>
    %22 = vector.multi_reduction <add>, %21, %cst_6 [1] : vector<8x256xf32> to vector<8xf32>
    %23 = vector.shape_cast %22 : vector<8xf32> to vector<8x1xf32>
    %24 = vector.broadcast %23 : vector<8x1xf32> to vector<8x4xf32>
    %25 = arith.mulf %6, %24 : vector<8x4xf32>
    %cst_7 = arith.constant dense<0.000000e+00> : vector<4xf32>
    %26 = vector.multi_reduction <add>, %25, %cst_7 [0] : vector<8x4xf32> to vector<4xf32>
    %27 = vector.shape_cast %26 : vector<4xf32> to vector<1x4xf32>
    %cst_8 = arith.constant 0.001953125 : f32
    %28 = vector.broadcast %cst_8 : f32 to vector<1x4xf32>
    %29 = arith.mulf %27, %28 : vector<1x4xf32>
    %cst_9 = arith.constant 0.000000e+00 : f32
    %30 = vector.broadcast %cst_9 : f32 to vector<1x4xf32>
    %31 = arith.maximumf %29, %30 : vector<1x4xf32>
    %c0_10 = arith.constant 0 : index
    %c0_11 = arith.constant 0 : index
    %c0_12 = arith.constant 0 : index
    %32 = vector.load %arg4[%c0_10, %c0_11, %c0_12] : memref<1x1x4xf32, #tpu.memory_space<vmem>>, vector<1x1x4xf32>
    %33 = vector.shape_cast %32 : vector<1x1x4xf32> to vector<1x4xf32>
    %c0_13 = arith.constant 0 : index
    %c0_14 = arith.constant 0 : index
    %c0_15 = arith.constant 0 : index
    %34 = vector.load %arg5[%c0_13, %c0_14, %c0_15] : memref<1x1x4xf32, #tpu.memory_space<vmem>>, vector<1x1x4xf32>
    %35 = vector.shape_cast %34 : vector<1x1x4xf32> to vector<1x4xf32>
    %cst_16 = arith.constant 9.99999974E-6 : f32
    %36 = vector.broadcast %cst_16 : f32 to vector<1x4xf32>
    %37 = arith.addf %31, %36 : vector<1x4xf32>
    %38 = math.rsqrt %37 : vector<1x4xf32>
    %39 = arith.mulf %33, %38 : vector<1x4xf32>
    %40 = arith.mulf %14, %39 : vector<1x4xf32>
    %41 = arith.subf %35, %40 : vector<1x4xf32>
    %42 = vector.broadcast %39 : vector<1x4xf32> to vector<8x4xf32>
    %43 = arith.mulf %6, %42 : vector<8x4xf32>
    %cst_17 = arith.constant dense<0.000000e+00> : vector<8xf32>
    %44 = vector.multi_reduction <add>, %43, %cst_17 [1] : vector<8x4xf32> to vector<8xf32>
    %45 = vector.shape_cast %44 : vector<8xf32> to vector<8x1xf32>
    %46 = vector.broadcast %41 : vector<1x4xf32> to vector<8x4xf32>
    %47 = arith.mulf %6, %46 : vector<8x4xf32>
    %cst_18 = arith.constant dense<0.000000e+00> : vector<8xf32>
    %48 = vector.multi_reduction <add>, %47, %cst_18 [1] : vector<8x4xf32> to vector<8xf32>
    %49 = vector.shape_cast %48 : vector<8xf32> to vector<8x1xf32>
    %50 = vector.broadcast %45 : vector<8x1xf32> to vector<8x256xf32>
    %51 = arith.mulf %0, %50 : vector<8x256xf32>
    %52 = vector.broadcast %49 : vector<8x1xf32> to vector<8x256xf32>
    %53 = arith.addf %51, %52 : vector<8x256xf32>
    %c0_19 = arith.constant 0 : index
    %c0_20 = arith.constant 0 : index
    %54 = vector.load %arg6[%c0_19, %c0_20] : memref<8x256xf32, #tpu.memory_space<vmem>>, vector<8x256xf32>
    tpu.vector_store %arg6[%c0_19, %c0_20], %53 {strides = array<i32>} : memref<8x256xf32, #tpu.memory_space<vmem>>, vector<8x256xf32>,
    return
  }
  func.func @transform_0(%arg0: i32, %arg1: memref<1xi32, #tpu.memory_space<smem>>) -> (i32, i32) {
    %c0_i32 = arith.constant 0 : i32
    %c0_i32_0 = arith.constant 0 : i32
    %c0_i32_1 = arith.constant 0 : i32
    return %c0_i32, %c0_i32_0 : i32, i32
  }
  func.func @transform_1(%arg0: i32, %arg1: memref<1xi32, #tpu.memory_space<smem>>) -> (i32, i32) {
    %c0_i32 = arith.constant 0 : i32
    %c0_i32_0 = arith.constant 0 : i32
    %c0_i32_1 = arith.constant 0 : i32
    return %c0_i32, %c0_i32_0 : i32, i32
  }
  func.func @transform_2(%arg0: i32, %arg1: memref<1xi32, #tpu.memory_space<smem>>) -> (i32, i32, i32) {
    %c0 = arith.constant 0 : index
    %0 = memref.load %arg1[%c0] : memref<1xi32, #tpu.memory_space<smem>>
    %c0_i32 = arith.constant 0 : i32
    %c0_i32_0 = arith.constant 0 : i32
    %c0_i32_1 = arith.constant 0 : i32
    return %0, %c0_i32, %c0_i32_0 : i32, i32, i32
  }
  func.func @transform_3(%arg0: i32, %arg1: memref<1xi32, #tpu.memory_space<smem>>) -> (i32, i32, i32) {
    %c0 = arith.constant 0 : index
    %0 = memref.load %arg1[%c0] : memref<1xi32, #tpu.memory_space<smem>>
    %c0_i32 = arith.constant 0 : i32
    %c0_i32_0 = arith.constant 0 : i32
    %c0_i32_1 = arith.constant 0 : i32
    return %0, %c0_i32, %c0_i32_0 : i32, i32, i32
  }
  func.func @transform_4(%arg0: i32, %arg1: memref<1xi32, #tpu.memory_space<smem>>) -> (i32, i32) {
    %c0_i32 = arith.constant 0 : i32
    %c0_i32_0 = arith.constant 0 : i32
    %c0_i32_1 = arith.constant 0 : i32
    return %c0_i32, %c0_i32_0 : i32, i32
  }
}

</mosaic_0001>

<llo_original>
// kernel: a_call__.1
$region0: #{a_call__.1}
  #allocation0 [shape = 'u32[]', space=smem, size = 0x4, offset = 0x4, fixed_abs, tag = 'smem constant byte address 0x4 - core index']
  #allocation1 [shape = 'u32[144,128]{1,0:T(1,128)}', space=vmem, size = 0x12000, scoped, tag = 'internal scratch']
  #allocation2 [shape = 's32[1]{0}', space=sflag, size = 0x4, scoped, tag = 'scoped memory for a_call__.1']
  #allocation3 [shape = 's32[1]{0:T(128)S(6)}', space=smem, size = 0x200, scoped, tag = 'prefetched SMEM operand 0']
  %s0 = inlined_call_operand.<no memory space> [shape: s32[1], index: 0, kind: input, shape index: {}]
  %s1 = inlined_call_operand.vmem [shape: f32[8,256], index: 1, kind: input, shape index: {}]
  %s2 = inlined_call_operand.vmem [shape: s32[8,1], index: 2, kind: input, shape index: {}]
  %s3 = inlined_call_operand.vmem [shape: f32[8,1,4], index: 3, kind: input, shape index: {}]
  %s4 = inlined_call_operand.vmem [shape: f32[8,1,4], index: 4, kind: input, shape index: {}]
  %s5 = inlined_call_operand.vmem [shape: f32[8,256], index: 5, kind: output, shape index: {}]
  %s6 = sld [smem:[#allocation0]]
  $region26: #{a_call__.1} parent=0
    _
  %s8 = ssub.s32 1, %s6
  %s9 = scalar_select 0, %s8, %s6
  %10 = sst [smem:[#allocation3]] %s0
  // Predicated region
  $region2: #{a_call__.1} parent=0 // pred_check
    _
  $region3: #{a_call__.1} parent=0 // pred_check_branch
    %12 = sbr.rel (0) target = $region5
  $region4: #{a_call__.1} parent=0 // pred_region
    _
  $region5: #{a_call__.1} parent=0 // pred_fallthru
    _
  // Predicated region
  $region6: #{a_call__.1} parent=0 // pred_check
    _
  $region7: #{a_call__.1} parent=0 // pred_check_branch
    %14 = sbr.rel (0) target = $region9
  $region8: #{a_call__.1} parent=0 // pred_region
    _
  $region9: #{a_call__.1} parent=0 // pred_fallthru
    _
  // Predicated region
  $region10: #{a_call__.1} parent=0 // pred_check
    _
  $region11: #{a_call__.1} parent=0 // pred_check_branch
    %16 = sbr.rel (0) target = $region13
  $region12: #{a_call__.1} parent=0 // pred_region
    %s17 = sld [smem:[#allocation3]]
    %p18 = scmp.lt.s32.totalorder %s17, 7
    %s19 = scalar_select %p18, %s17, 7
    %s20 = scalar_lea.vmem %s3, %s19
    %s21 = sld [smem:[#allocation3]]
  $region13: #{a_call__.1} parent=0 // pred_fallthru
    _
  // Predicated region
  $region14: #{a_call__.1} parent=0 // pred_check
    _
  $region15: #{a_call__.1} parent=0 // pred_check_branch
    %23 = sbr.rel (0) target = $region17
  $region16: #{a_call__.1} parent=0 // pred_region
    %s24 = sld [smem:[#allocation3]]
    %p25 = scmp.lt.s32.totalorder %s24, 7
    %s26 = scalar_select %p25, %s24, 7
    %s27 = scalar_lea.vmem %s4, %s26
    %s28 = sld [smem:[#allocation3]]
  $region17: #{a_call__.1} parent=0 // pred_fallthru
    _
  %s29 = sld [smem:[#allocation3]]
  %p30 = scmp.lt.s32.totalorder %s29, 7
  %s31 = scalar_select %p30, %s29, 7
  %s32 = scalar_lea.vmem %s3, %s31
  %s33 = sld [smem:[#allocation3]]
  %p34 = scmp.lt.s32.totalorder %s33, 7
  %s35 = scalar_select %p34, %s33, 7
  %s36 = scalar_lea.vmem %s4, %s35
  %s37 = sld [smem:[#allocation3]]
  %p38 = scmp.lt.s32.totalorder %s37, 7
  %s39 = scalar_select %p38, %s37, 7
  %s40 = scalar_lea.vmem %s3, %s39
  %s41 = sld [smem:[#allocation3]]
  %s42 = sld [smem:[#allocation3]]
  %p43 = scmp.lt.s32.totalorder %s42, 7
  %s44 = scalar_select %p43, %s42, 7
  %s45 = scalar_lea.vmem %s4, %s44
  %s46 = sld [smem:[#allocation3]]
  %v47 = vld [vmem:[%s1] sm:$0xff]
  %v48 = vld [vmem:[%s1 + $0x8] sm:$0xff]
  %v49 = vld [vmem:[%s2] sm:$0xff]
  %v50 = vlaneseq
  %v51 = vand.u32 %v50, 127
  %52 = vset.pattern.permute.xlu0 0
  %53 = vperm.xlu0 %52, %v49
  %v54 = vpop.permute.xlu0 %53
  %vm55 = vcmp.eq.s32.totalorder %v54, %v51
  %v56 = vsel %vm55, 1, 0
  %v57 = vcvt.s32.f32 %v56
  %v58 = vadd.f32 %v47, %v48
  %59 = vadd.xlane.f32.xlu0 %v58
  %v60 = vpop.xlane.xlu0 %59
  %v61 = vmul.f32 %v57, %v60
  %vm62 = vcmask 31744
  %v63 = vsel %vm62, %v61, 0.0
  %v64 = vrot.slane %v63, 4
  %v65 = vadd.f32 %v63, %v64
  %v66 = vrot.slane %v65, 2
  %v67 = vadd.f32 %v65, %v66
  %v68 = vrot.slane %v67, 1
  %v69 = vadd.f32 %v67, %v68
  %v70 = vmul.f32 %v69, 0.001953125
  %v71 = vmul.f32 %v57, %v70
  %v72 = vsel %vm62, %v71, 0.0
  %73 = vadd.xlane.f32.xlu0 %v72
  %v74 = vpop.xlane.xlu0 %73
  %v75 = vsub.f32 %v47, %v74
  %v76 = vsub.f32 %v48, %v74
  %v77 = vmul.f32 %v75, %v75
  %v78 = vmul.f32 %v76, %v76
  %v79 = vadd.f32 %v77, %v78
  %80 = vadd.xlane.f32.xlu0 %v79
  %v81 = vpop.xlane.xlu0 %80
  %v82 = vmul.f32 %v57, %v81
  %v83 = vsel %vm62, %v82, 0.0
  %v84 = vrot.slane %v83, 4
  %v85 = vadd.f32 %v83, %v84
  %v86 = vrot.slane %v85, 2
  %v87 = vadd.f32 %v85, %v86
  %v88 = vrot.slane %v87, 1
  %v89 = vadd.f32 %v87, %v88
  %v90 = vmul.f32 %v89, 0.001953125
  %v91 = vmax.f32 %v90, 0.0
  %v92 = vld [vmem:[%s40] sm:$0x1]
  %v93 = vld [vmem:[%s45] sm:$0x1]
  %v94 = vadd.f32 %v91, 1e-05
  %v95 = vrsqrt.pop %v94
  %v96 = vmul.f32 %v92, %v95
  %v97 = vmul.f32 %v70, %v96
  %v98 = vsub.f32 %v93, %v97
  %v100 = vlaneseq
  %v101 = vshrl.u32 %v100, 7
  %v102 = vsub.s32 0, %v101
  %v103 = vrot.slane %v96, %v102
  %v105 = vmul.f32 %v57, %v103
  %v106 = vsel %vm62, %v105, 0.0
  %107 = vadd.xlane.f32.xlu0 %v106
  %v108 = vpop.xlane.xlu0 %107
  %v110 = vlaneseq
  %v111 = vshrl.u32 %v110, 7
  %v112 = vsub.s32 0, %v111
  %v113 = vrot.slane %v98, %v112
  %v115 = vmul.f32 %v57, %v113
  %v116 = vsel %vm62, %v115, 0.0
  %117 = vadd.xlane.f32.xlu0 %v116
  %v118 = vpop.xlane.xlu0 %117
  %v119 = vmul.f32 %v47, %v108
  %v120 = vmul.f32 %v48, %v108
  %v121 = vadd.f32 %v119, %v118
  %v122 = vadd.f32 %v120, %v118
  %123 = vst [vmem:[%s5] sm:$0xff] %v121
  %124 = vst [vmem:[%s5 + $0x8] sm:$0xff] %v122
  // Predicated region
  $region18: #{a_call__.1} parent=0 // pred_check
    _
  $region19: #{a_call__.1} parent=0 // pred_check_branch
    %126 = sbr.rel (0) target = $region21
  $region20: #{a_call__.1} parent=0 // pred_region
    _
  $region21: #{a_call__.1} parent=0 // pred_fallthru
    _
  // Predicated region
  $region22: #{a_call__.1} parent=0 // pred_check
    _
  $region23: #{a_call__.1} parent=0 // pred_check_branch
    %128 = sbr.rel (0) target = $region25
  $region24: #{a_call__.1} parent=0 // pred_region
    _
  $region25: #{a_call__.1} parent=0 // pred_fallthru
    _

</llo_original>
